<compile_context>
chip_gen: v7x
topology: tpu7x:2x2x1
jax: 0.10.0
libtpu: 0.0.40
codegen_flags: <defaults>
</compile_context>

<pallas_src>
import math
import sys

import jax
import jax.numpy as jnp
from jax import lax
from jax.experimental import pallas as pl
from jax.experimental.pallas import tpu as pltpu

# Python float (NOT a jax array) -> lowers to a literal; matches the module's
# `eps = sys.float_info.epsilon`.
EPS = float(sys.float_info.epsilon)  # 2.220446049250313e-16

_LANE = 128
_SUBLANE = 8
_TARGET_INPUT_BYTES = 4 * 1024 * 1024    # combined input-block budget per grid step
_VMEM_LIMIT_BYTES = 32 * 1024 * 1024     # safe on v5e/v6e (128 MiB) and v7x (64 MiB)


def _round_up(x, m):
    return (x + m - 1) // m * m


def _reference(heads):
    """Pure-JAX reference (also the fallback for non-lane-aligned sizes)."""
    num_head = len(heads)
    if num_head <= 1:
        return jnp.float32(0.0)
    loss = jnp.float32(0.0)
    cnt = 0
    for i in range(num_head - 1):
        for j in range(i + 1, num_head):
            d = heads[i].astype(jnp.float32) - heads[j].astype(jnp.float32)
            loss = loss + jnp.mean(d * d)
            cnt += 1
    return jnp.float32(cnt) / (loss + EPS)


def _make_attention_loss_kernel(num_head, rows, tile_r, tiles_per_core,
                                may_need_mask):
    """Kernel over `num_head` (rows, 128) head refs, tiled along the row axis."""
    inv_h = 1.0 / float(num_head)
    n_chunks = tile_r // _SUBLANE

    def _fold(x):
        # (tile_r, 128) -> (8, 128) by summing sublane-aligned chunks: pure
        # vreg-wise adds (VALU), no cross-lane movement.
        return x.reshape(n_chunks, _SUBLANE, _LANE).sum(axis=0)

    def kernel(*refs):
        head_refs = refs[:num_head]
        o_ref = refs[num_head]            # (1, 8, 128) f32, resident across t

        c = pl.program_id(0)              # core / partial-sum index (parallel)
        t = pl.program_id(1)              # row-tile index within this core

        @pl.when(t == 0)
        def _init():
            o_ref[...] = jnp.zeros_like(o_ref)

        # Pass 1: mean over heads (O(H) adds), accumulated in f32.
        mean = head_refs[0][...].astype(jnp.float32)
        for r in head_refs[1:]:
            mean = mean + r[...].astype(jnp.float32)
        mean = mean * inv_h

        # Pass 2: re-read each head tile from VMEM (keeps live vregs ~2-3 tiles
        # instead of H tiles -> no spill stores on the scarce vst slot).
        sq = None
        for r in head_refs:
            d = r[...].astype(jnp.float32) - mean
            sq = d * d if sq is None else sq + d * d

        if may_need_mask:
            # Only the step(s) that overrun the true row extent pay for the mask.
            row_start = (c * tiles_per_core + t) * tile_r   # un-clamped position
            is_full = row_start + tile_r <= rows

            @pl.when(is_full)
            def _acc_full():
                o_ref[...] += _fold(sq)[None]

            @pl.when(jnp.logical_not(is_full))
            def _acc_masked():
                ridx = lax.broadcasted_iota(jnp.int32, sq.shape, 0) + row_start
                sq_m = jnp.where(ridx < rows, sq, 0.0)
                o_ref[...] += _fold(sq_m)[None]
        else:
            o_ref[...] += _fold(sq)[None]

    return kernel


def attention_loss(heads, *, target_input_bytes=_TARGET_INPUT_BYTES):
    """heads: list of arrays with identical shape (e.g. [B, C, Hs, Ws])."""
    num_head = len(heads)
    if num_head <= 1:
        return jnp.float32(0.0)

    n_elem = int(math.prod(heads[0].shape))
    num_pairs = num_head * (num_head - 1) // 2

    if n_elem % _LANE != 0:
        # TODO(synk): lane-remainder layouts (B*C*H*W not a multiple of 128) fall
        # back to the pure-JAX path; a padded-copy kernel path is not worth it.
        return _reference(heads)

    rows = n_elem // _LANE
    # Metadata-only reshape of a contiguous buffer: no extra HBM traffic, and the
    # (rows, 128) view makes every (8,128) vreg and every block DMA fully dense.
    heads2d = [h.reshape(rows, _LANE) for h in heads]
    itemsize = jnp.dtype(heads2d[0].dtype).itemsize

    # Row-tile size: multiple of 8, sized so the H input blocks together stay
    # within the budget.  Double-buffered (2x) plus ~3 f32 intermediate tiles
    # this stays inside the raised vmem_limit_bytes on all of v5e/v6e/v7x.
    per_row_bytes = num_head * _LANE * itemsize
    tile_r = max(_SUBLANE,
                 (target_input_bytes // per_row_bytes) // _SUBLANE * _SUBLANE)
    tile_r = min(tile_r, _round_up(rows, _SUBLANE))

    num_tiles = pl.cdiv(rows, tile_r)
    # Split the reduction across the 2 TensorCores on v7x (parallel leading axis,
    # per-core partial sums combined in the wrapper); serial/no-op on v5e/v6e.
    num_cores = 2 if num_tiles >= 2 else 1
    tiles_per_core = pl.cdiv(num_tiles, num_cores)
    may_need_mask = (num_cores * tiles_per_core * tile_r) > rows

    kernel = _make_attention_loss_kernel(num_head, rows, tile_r, tiles_per_core,
                                         may_need_mask)

    def in_index_map(c, t):
        # Clamp so an odd tile count never produces an out-of-range block; the
        # duplicate step is fully masked to zero inside the kernel.
        return (jnp.minimum(c * tiles_per_core + t, num_tiles - 1), 0)

    partials = pl.pallas_call(
        kernel,
        out_shape=jax.ShapeDtypeStruct((num_cores, _SUBLANE, _LANE), jnp.float32),
        grid=(num_cores, tiles_per_core),
        in_specs=[pl.BlockSpec((tile_r, _LANE), in_index_map)
                  for _ in range(num_head)],
        out_specs=pl.BlockSpec((1, _SUBLANE, _LANE), lambda c, t: (c, 0, 0)),
        compiler_params=pltpu.CompilerParams(
            dimension_semantics=("parallel", "arbitrary"),
            vmem_limit_bytes=_VMEM_LIMIT_BYTES),
    )(*heads2d)

    # Finalize in the wrapper (single tiny reduce + scalar math):
    #   sum_{i<j} ||xi - xj||^2 = H * sum_i ||xi - mean||^2
    #   loss = sum_{i<j} MSE(xi, xj) = pair_sq_sum / n_elem
    pair_sq_sum = partials.sum() * jnp.float32(num_head)
    loss = pair_sq_sum / jnp.float32(n_elem)
    return jnp.float32(num_pairs) / (loss + EPS)


if __name__ == "__main__":
    key = jax.random.PRNGKey(0)
    num_head = 4
    B, C, H, W = 2, 4, 16, 16  # per-head attention map shape (NCHW)

    keys = jax.random.split(key, num_head)
    heads = [jax.random.normal(k, (B, C, H, W), dtype=jnp.float32) for k in keys]

    out = jax.block_until_ready(attention_loss(heads))
    ref = jax.block_until_ready(_reference(heads))
    assert jnp.allclose(out, ref, rtol=1e-4, atol=1e-6), (out, ref)

    # Also exercise the trivial num_head <= 1 branch.
    assert float(attention_loss(heads[:1])) == 0.0

    print("KERNEL_OK")
</pallas_src>

<mosaic_0001>
module attributes {stable_mosaic.version = 11 : i64} {
  func.func @kernel(%arg0: i32, %arg1: i32, %arg2: memref<16x128xf32, #tpu.memory_space<vmem>>, %arg3: memref<16x128xf32, #tpu.memory_space<vmem>>, %arg4: memref<16x128xf32, #tpu.memory_space<vmem>>, %arg5: memref<16x128xf32, #tpu.memory_space<vmem>>, %arg6: memref<1x8x128xf32, #tpu.memory_space<vmem>>) attributes {dimension_semantics = [#tpu.dimension_semantics<parallel>, #tpu.dimension_semantics<arbitrary>], iteration_bounds = array<i64: 1, 1>, scalar_prefetch = 0 : i64, scratch_operands = 0 : i64, tpu.core_type = #tpu.core_type<tc>, window_params = [{transform_indices = @transform_0, window_bounds = array<i64: 16, 128>}, {transform_indices = @transform_1, window_bounds = array<i64: 16, 128>}, {transform_indices = @transform_2, window_bounds = array<i64: 16, 128>}, {transform_indices = @transform_3, window_bounds = array<i64: 16, 128>}, {transform_indices = @transform_4, window_bounds = array<i64: 1, 8, 128>}]} {
    %c0_i32 = arith.constant 0 : i32
    %0 = arith.cmpi eq, %arg1, %c0_i32 : i32
    %1 = arith.extui %0 : i1 to i32
    %c0_i32_0 = arith.constant 0 : i32
    %2 = arith.cmpi ne, %1, %c0_i32_0 : i32
    scf.if %2 {
      %cst_23 = arith.constant 0.000000e+00 : f32
      %33 = vector.broadcast %cst_23 : f32 to vector<1x8x128xf32>
      %c0_24 = arith.constant 0 : index
      %c0_25 = arith.constant 0 : index
      %c0_26 = arith.constant 0 : index
      %34 = vector.load %arg6[%c0_24, %c0_25, %c0_26] : memref<1x8x128xf32, #tpu.memory_space<vmem>>, vector<1x8x128xf32>
      tpu.vector_store %arg6[%c0_24, %c0_25, %c0_26], %33 {strides = array<i32>} : memref<1x8x128xf32, #tpu.memory_space<vmem>>, vector<1x8x128xf32>,
    } else {
    }
    %c0 = arith.constant 0 : index
    %c0_1 = arith.constant 0 : index
    %3 = vector.load %arg2[%c0, %c0_1] : memref<16x128xf32, #tpu.memory_space<vmem>>, vector<16x128xf32>
    %c0_2 = arith.constant 0 : index
    %c0_3 = arith.constant 0 : index
    %4 = vector.load %arg3[%c0_2, %c0_3] : memref<16x128xf32, #tpu.memory_space<vmem>>, vector<16x128xf32>
    %5 = arith.addf %3, %4 : vector<16x128xf32>
    %c0_4 = arith.constant 0 : index
    %c0_5 = arith.constant 0 : index
    %6 = vector.load %arg4[%c0_4, %c0_5] : memref<16x128xf32, #tpu.memory_space<vmem>>, vector<16x128xf32>
    %7 = arith.addf %5, %6 : vector<16x128xf32>
    %c0_6 = arith.constant 0 : index
    %c0_7 = arith.constant 0 : index
    %8 = vector.load %arg5[%c0_6, %c0_7] : memref<16x128xf32, #tpu.memory_space<vmem>>, vector<16x128xf32>
    %9 = arith.addf %7, %8 : vector<16x128xf32>
    %cst = arith.constant 2.500000e-01 : f32
    %10 = vector.broadcast %cst : f32 to vector<16x128xf32>
    %11 = arith.mulf %9, %10 : vector<16x128xf32>
    %c0_8 = arith.constant 0 : index
    %c0_9 = arith.constant 0 : index
    %12 = vector.load %arg2[%c0_8, %c0_9] : memref<16x128xf32, #tpu.memory_space<vmem>>, vector<16x128xf32>
    %13 = arith.subf %12, %11 : vector<16x128xf32>
    %14 = arith.mulf %13, %13 : vector<16x128xf32>
    %c0_10 = arith.constant 0 : index
    %c0_11 = arith.constant 0 : index
    %15 = vector.load %arg3[%c0_10, %c0_11] : memref<16x128xf32, #tpu.memory_space<vmem>>, vector<16x128xf32>
    %16 = arith.subf %15, %11 : vector<16x128xf32>
    %17 = arith.mulf %16, %16 : vector<16x128xf32>
    %18 = arith.addf %14, %17 : vector<16x128xf32>
    %c0_12 = arith.constant 0 : index
    %c0_13 = arith.constant 0 : index
    %19 = vector.load %arg4[%c0_12, %c0_13] : memref<16x128xf32, #tpu.memory_space<vmem>>, vector<16x128xf32>
    %20 = arith.subf %19, %11 : vector<16x128xf32>
    %21 = arith.mulf %20, %20 : vector<16x128xf32>
    %22 = arith.addf %18, %21 : vector<16x128xf32>
    %c0_14 = arith.constant 0 : index
    %c0_15 = arith.constant 0 : index
    %23 = vector.load %arg5[%c0_14, %c0_15] : memref<16x128xf32, #tpu.memory_space<vmem>>, vector<16x128xf32>
    %24 = arith.subf %23, %11 : vector<16x128xf32>
    %25 = arith.mulf %24, %24 : vector<16x128xf32>
    %26 = arith.addf %22, %25 : vector<16x128xf32>
    %c0_16 = arith.constant 0 : index
    %c0_17 = arith.constant 0 : index
    %c0_18 = arith.constant 0 : index
    %27 = vector.load %arg6[%c0_16, %c0_17, %c0_18] : memref<1x8x128xf32, #tpu.memory_space<vmem>>, vector<1x8x128xf32>
    %28 = vector.shape_cast %26 : vector<16x128xf32> to vector<2x8x128xf32>
    %cst_19 = arith.constant dense<0.000000e+00> : vector<8x128xf32>
    %29 = vector.multi_reduction <add>, %28, %cst_19 [0] : vector<2x8x128xf32> to vector<8x128xf32>
    %30 = vector.shape_cast %29 : vector<8x128xf32> to vector<1x8x128xf32>
    %31 = arith.addf %27, %30 : vector<1x8x128xf32>
    %c0_20 = arith.constant 0 : index
    %c0_21 = arith.constant 0 : index
    %c0_22 = arith.constant 0 : index
    %32 = vector.load %arg6[%c0_20, %c0_21, %c0_22] : memref<1x8x128xf32, #tpu.memory_space<vmem>>, vector<1x8x128xf32>
    tpu.vector_store %arg6[%c0_20, %c0_21, %c0_22], %31 {strides = array<i32>} : memref<1x8x128xf32, #tpu.memory_space<vmem>>, vector<1x8x128xf32>,
    return
  }
  func.func @transform_0(%arg0: i32, %arg1: i32) -> (i32, i32) {
    %c1_i32 = arith.constant 1 : i32
    %0 = arith.muli %arg0, %c1_i32 : i32
    %1 = arith.addi %0, %arg1 : i32
    %c0_i32 = arith.constant 0 : i32
    %2 = arith.minsi %1, %c0_i32 : i32
    %c0_i32_0 = arith.constant 0 : i32
    %c0_i32_1 = arith.constant 0 : i32
    return %2, %c0_i32_0 : i32, i32
  }
  func.func @transform_1(%arg0: i32, %arg1: i32) -> (i32, i32) {
    %c1_i32 = arith.constant 1 : i32
    %0 = arith.muli %arg0, %c1_i32 : i32
    %1 = arith.addi %0, %arg1 : i32
    %c0_i32 = arith.constant 0 : i32
    %2 = arith.minsi %1, %c0_i32 : i32
    %c0_i32_0 = arith.constant 0 : i32
    %c0_i32_1 = arith.constant 0 : i32
    return %2, %c0_i32_0 : i32, i32
  }
  func.func @transform_2(%arg0: i32, %arg1: i32) -> (i32, i32) {
    %c1_i32 = arith.constant 1 : i32
    %0 = arith.muli %arg0, %c1_i32 : i32
    %1 = arith.addi %0, %arg1 : i32
    %c0_i32 = arith.constant 0 : i32
    %2 = arith.minsi %1, %c0_i32 : i32
    %c0_i32_0 = arith.constant 0 : i32
    %c0_i32_1 = arith.constant 0 : i32
    return %2, %c0_i32_0 : i32, i32
  }
  func.func @transform_3(%arg0: i32, %arg1: i32) -> (i32, i32) {
    %c1_i32 = arith.constant 1 : i32
    %0 = arith.muli %arg0, %c1_i32 : i32
    %1 = arith.addi %0, %arg1 : i32
    %c0_i32 = arith.constant 0 : i32
    %2 = arith.minsi %1, %c0_i32 : i32
    %c0_i32_0 = arith.constant 0 : i32
    %c0_i32_1 = arith.constant 0 : i32
    return %2, %c0_i32_0 : i32, i32
  }
  func.func @transform_4(%arg0: i32, %arg1: i32) -> (i32, i32, i32) {
    %c0_i32 = arith.constant 0 : i32
    %c0_i32_0 = arith.constant 0 : i32
    %c0_i32_1 = arith.constant 0 : i32
    return %arg0, %c0_i32, %c0_i32_0 : i32, i32, i32
  }
}

</mosaic_0001>

<llo_original>
// kernel: tpu_custom_call.1
$region0: #{tpu_custom_call.1}
  #allocation0 [shape = 'u32[]', space=smem, size = 0x4, offset = 0x4, fixed_abs, tag = 'smem constant byte address 0x4 - core index']
  #allocation1 [shape = 'u32[144,128]{1,0:T(1,128)}', space=vmem, size = 0x12000, scoped, tag = 'internal scratch']
  %s0 = inlined_call_operand.hbm [shape: f32[16,128], index: 0, kind: input, shape index: {}]
  %s1 = inlined_call_operand.hbm [shape: f32[16,128], index: 1, kind: input, shape index: {}]
  %s2 = inlined_call_operand.hbm [shape: f32[16,128], index: 2, kind: input, shape index: {}]
  %s3 = inlined_call_operand.hbm [shape: f32[16,128], index: 3, kind: input, shape index: {}]
  %s4 = inlined_call_operand.hbm [shape: f32[1,8,128], index: 4, kind: output, shape index: {}]
  %s5 = sld [smem:[#allocation0]]
  $region46: #{tpu_custom_call.1} parent=0
    _
  %s7 = ssub.s32 1, %s5
  %s8 = scalar_select 0, %s7, %s5
  $region1: #{tpu_custom_call.1} parent=0
    #allocation2 [shape = 'u8[8192]{0}', space=vmem, size = 0x2000, scoped, tag = 'input window, operand 0, single buffered']
    #allocation3 [shape = 's32[1]{0}', space=sflag, size = 0x4, scoped, tag = 'scoped memory for tpu_custom_call.1']
    #allocation4 [shape = 's32[1]{0}', space=sflag, size = 0x4, scoped, tag = 'scoped memory for tpu_custom_call.1']
    #allocation5 [shape = 'u8[8192]{0}', space=vmem, size = 0x2000, scoped, tag = 'input window, operand 1, single buffered']
    #allocation6 [shape = 's32[1]{0}', space=sflag, size = 0x4, scoped, tag = 'scoped memory for tpu_custom_call.1']
    #allocation7 [shape = 'u8[8192]{0}', space=vmem, size = 0x2000, scoped, tag = 'input window, operand 2, single buffered']
    #allocation8 [shape = 'u8[8192]{0}', space=vmem, size = 0x2000, scoped, tag = 'input window, operand 3, single buffered']
    #allocation9 [shape = 's32[1]{0}', space=sflag, size = 0x4, scoped, tag = 'scoped memory for tpu_custom_call.1']
    #allocation10 [shape = 'u8[4096]{0}', space=vmem, size = 0x1000, scoped, tag = 'output window, operand 0, single buffered']
    %9 = vsyncpa [#allocation3], 0
    %10 = vsyncpa [#allocation6], 0
    %11 = vsyncpa [#allocation9], 0
    %12 = vsyncpa [#allocation4], 0
    // Predicated region
    $region2: #{tpu_custom_call.1} parent=1 // pred_check
      _
    $region3: #{tpu_custom_call.1} parent=1 // pred_check_branch
      %14 = sbr.rel (0) target = $region5
    $region4: #{tpu_custom_call.1} parent=1 // pred_region
      %s15 = sadd.s32 0, 0
      %p16 = scmp.lt.s32.totalorder %s15, 0
      %s17 = scalar_select %p16, %s15, 0
      %s18 = smul.u32 2, %s17
      %s20 = ssub.s32 256, 256
      %21 = vsyncadd [#allocation3], %s20
      %s22 = smul.addr %s18, 128
      %s23 = scalar_lea.hbm %s0, %s22
      %s24 = sshll.u32 [#allocation2], 4
      %s25 = int_to_ptr.vmem [resolvable:$true] %s24
      %30 = dma.hbm_to_vmem [thread:$0]  %s23, 256, %s25, [#allocation3], 128, 128, 8
    $region5: #{tpu_custom_call.1} parent=1 // pred_fallthru
      _
    // Predicated region
    $region6: #{tpu_custom_call.1} parent=1 // pred_check
      _
    $region7: #{tpu_custom_call.1} parent=1 // pred_check_branch
      %32 = sbr.rel (0) target = $region9
    $region8: #{tpu_custom_call.1} parent=1 // pred_region
      %s33 = sadd.s32 0, 0
      %p34 = scmp.lt.s32.totalorder %s33, 0
      %s35 = scalar_select %p34, %s33, 0
      %s36 = smul.u32 2, %s35
      %s38 = ssub.s32 256, 256
      %39 = vsyncadd [#allocation6], %s38
      %s40 = smul.addr %s36, 128
      %s41 = scalar_lea.hbm %s1, %s40
      %s42 = sshll.u32 [#allocation5], 4
      %s43 = int_to_ptr.vmem [resolvable:$true] %s42
      %48 = dma.hbm_to_vmem [thread:$0]  %s41, 256, %s43, [#allocation6], 128, 128, 8
    $region9: #{tpu_custom_call.1} parent=1 // pred_fallthru
      _
    // Predicated region
    $region10: #{tpu_custom_call.1} parent=1 // pred_check
      _
    $region11: #{tpu_custom_call.1} parent=1 // pred_check_branch
      %50 = sbr.rel (0) target = $region13
    $region12: #{tpu_custom_call.1} parent=1 // pred_region
      %s51 = sadd.s32 0, 0
      %p52 = scmp.lt.s32.totalorder %s51, 0
      %s53 = scalar_select %p52, %s51, 0
      %s54 = smul.u32 2, %s53
      %s56 = ssub.s32 256, 256
      %57 = vsyncadd [#allocation6], %s56
      %s58 = smul.addr %s54, 128
      %s59 = scalar_lea.hbm %s2, %s58
      %s60 = sshll.u32 [#allocation7], 4
      %s61 = int_to_ptr.vmem [resolvable:$true] %s60
      %66 = dma.hbm_to_vmem [thread:$0]  %s59, 256, %s61, [#allocation6], 128, 128, 8
    $region13: #{tpu_custom_call.1} parent=1 // pred_fallthru
      _
    // Predicated region
    $region14: #{tpu_custom_call.1} parent=1 // pred_check
      _
    $region15: #{tpu_custom_call.1} parent=1 // pred_check_branch
      %68 = sbr.rel (0) target = $region17
    $region16: #{tpu_custom_call.1} parent=1 // pred_region
      %s69 = sadd.s32 0, 0
      %p70 = scmp.lt.s32.totalorder %s69, 0
      %s71 = scalar_select %p70, %s69, 0
      %s72 = smul.u32 2, %s71
      %s74 = ssub.s32 256, 256
      %75 = vsyncadd [#allocation9], %s74
      %s76 = smul.addr %s72, 128
      %s77 = scalar_lea.hbm %s3, %s76
      %s78 = sshll.u32 [#allocation8], 4
      %s79 = int_to_ptr.vmem [resolvable:$true] %s78
      %84 = dma.hbm_to_vmem [thread:$0]  %s77, 256, %s79, [#allocation9], 128, 128, 8
    $region17: #{tpu_custom_call.1} parent=1 // pred_fallthru
      _
    // Predicated region
    $region18: #{tpu_custom_call.1} parent=1 // pred_check
      _
    $region19: #{tpu_custom_call.1} parent=1 // pred_check_branch
      %86 = sbr.rel (0) target = $region21
    $region20: #{tpu_custom_call.1} parent=1 // pred_region
      %87 = dma.done [#allocation3], 256
    $region21: #{tpu_custom_call.1} parent=1 // pred_fallthru
      _
    // Predicated region
    $region22: #{tpu_custom_call.1} parent=1 // pred_check
      _
    $region23: #{tpu_custom_call.1} parent=1 // pred_check_branch
      %89 = sbr.rel (0) target = $region25
    $region24: #{tpu_custom_call.1} parent=1 // pred_region
      %90 = dma.done [#allocation6], 256
    $region25: #{tpu_custom_call.1} parent=1 // pred_fallthru
      _
    // Predicated region
    $region26: #{tpu_custom_call.1} parent=1 // pred_check
      _
    $region27: #{tpu_custom_call.1} parent=1 // pred_check_branch
      %92 = sbr.rel (0) target = $region29
    $region28: #{tpu_custom_call.1} parent=1 // pred_region
      %93 = dma.done [#allocation6], 256
    $region29: #{tpu_custom_call.1} parent=1 // pred_fallthru
      _
    // Predicated region
    $region30: #{tpu_custom_call.1} parent=1 // pred_check
      _
    $region31: #{tpu_custom_call.1} parent=1 // pred_check_branch
      %95 = sbr.rel (0) target = $region33
    $region32: #{tpu_custom_call.1} parent=1 // pred_region
      %96 = dma.done [#allocation9], 256
    $region33: #{tpu_custom_call.1} parent=1 // pred_fallthru
      _
    %s97 = sadd.s32 0, 0
    %p98 = scmp.lt.s32.totalorder %s97, 0
    %s99 = scalar_select %p98, %s97, 0
    %s100 = smul.u32 2, %s99
    %s101 = sadd.s32 0, 0
    %p102 = scmp.lt.s32.totalorder %s101, 0
    %s103 = scalar_select %p102, %s101, 0
    %s104 = smul.u32 2, %s103
    %s105 = sadd.s32 0, 0
    %p106 = scmp.lt.s32.totalorder %s105, 0
    %s107 = scalar_select %p106, %s105, 0
    %s108 = smul.u32 2, %s107
    %s109 = sadd.s32 0, 0
    %p110 = scmp.lt.s32.totalorder %s109, 0
    %s111 = scalar_select %p110, %s109, 0
    %s112 = smul.u32 2, %s111
    %p113 = scmp.eq.s32.totalorder 0, 0
    // Predicated region
    $region34: #{tpu_custom_call.1} parent=1 // pred_check
      %p114 = pneg %p113
    $region35: #{tpu_custom_call.1} parent=1 // pred_check_branch
      %116 = sbr.rel (%p114) target = $region37
    $region36: #{tpu_custom_call.1} parent=1 // pred_region
      %117 = vst [vmem:[#allocation10] sm:$0xff] 0.0
    $region37: #{tpu_custom_call.1} parent=1 // pred_fallthru
      _
    %v118 = vld [vmem:[#allocation2] sm:$0xff]
    %v119 = vld [vmem:[#allocation2 + $0x8] sm:$0xff]
    %v120 = vld [vmem:[#allocation5] sm:$0xff]
    %v121 = vld [vmem:[#allocation5 + $0x8] sm:$0xff]
    %v122 = vadd.f32 %v118, %v120
    %v123 = vadd.f32 %v119, %v121
    %v124 = vld [vmem:[#allocation7] sm:$0xff]
    %v125 = vld [vmem:[#allocation7 + $0x8] sm:$0xff]
    %v126 = vadd.f32 %v122, %v124
    %v127 = vadd.f32 %v123, %v125
    %v128 = vld [vmem:[#allocation8] sm:$0xff]
    %v129 = vld [vmem:[#allocation8 + $0x8] sm:$0xff]
    %v130 = vadd.f32 %v126, %v128
    %v131 = vadd.f32 %v127, %v129
    %v132 = vmul.f32 %v130, 0.25
    %v133 = vmul.f32 %v131, 0.25
    %v134 = vsub.f32 %v118, %v132
    %v135 = vsub.f32 %v119, %v133
    %v136 = vmul.f32 %v134, %v134
    %v137 = vmul.f32 %v135, %v135
    %v138 = vsub.f32 %v120, %v132
    %v139 = vsub.f32 %v121, %v133
    %v140 = vmul.f32 %v138, %v138
    %v141 = vmul.f32 %v139, %v139
    %v142 = vadd.f32 %v136, %v140
    %v143 = vadd.f32 %v137, %v141
    %v144 = vsub.f32 %v124, %v132
    %v145 = vsub.f32 %v125, %v133
    %v146 = vmul.f32 %v144, %v144
    %v147 = vmul.f32 %v145, %v145
    %v148 = vadd.f32 %v142, %v146
    %v149 = vadd.f32 %v143, %v147
    %v150 = vsub.f32 %v128, %v132
    %v151 = vsub.f32 %v129, %v133
    %v152 = vmul.f32 %v150, %v150
    %v153 = vmul.f32 %v151, %v151
    %v154 = vadd.f32 %v148, %v152
    %v155 = vadd.f32 %v149, %v153
    %v156 = vld [vmem:[#allocation10] sm:$0xff]
    %v157 = vadd.f32 %v154, %v155
    %v158 = vadd.f32 %v156, %v157
    %159 = vst [vmem:[#allocation10] sm:$0xff] %v158
    // Predicated region
    $region38: #{tpu_custom_call.1} parent=1 // pred_check
      _
    $region39: #{tpu_custom_call.1} parent=1 // pred_check_branch
      %161 = sbr.rel (0) target = $region41
    $region40: #{tpu_custom_call.1} parent=1 // pred_region
      %s163 = ssub.s32 128, 128
      %164 = vsyncadd [#allocation4], %s163
      %s166 = sshll.u32 [#allocation10], 4
      %s167 = int_to_ptr.vmem [resolvable:$true] %s166
      %169 = dma.vmem_to_hbm [thread:$0]  %s167, 128, %s4, [#allocation4]
    $region41: #{tpu_custom_call.1} parent=1 // pred_fallthru
      _
    // Predicated region
    $region42: #{tpu_custom_call.1} parent=1 // pred_check
      _
    $region43: #{tpu_custom_call.1} parent=1 // pred_check_branch
      %171 = sbr.rel (0) target = $region45
    $region44: #{tpu_custom_call.1} parent=1 // pred_region
      %172 = dma.done [#allocation4], 128
    $region45: #{tpu_custom_call.1} parent=1 // pred_fallthru
      _
    %173 = vsyncpa [#allocation3], 1
    %174 = vsyncpa [#allocation6], 1
    %175 = vsyncpa [#allocation9], 1
    %176 = vsyncpa [#allocation4], 1

</llo_original>
